<compile_context>
chip_gen: v6e
topology: v6e:2x2x1
jax: 0.10.0
libtpu: 0.0.40
codegen_flags: <defaults>
</compile_context>

<pallas_src>
import math
import numpy as np
import jax
import jax.numpy as jnp
from jax.experimental import pallas as pl
from jax.experimental.pallas import tpu as pltpu


def _round_up(x, m):
    return ((x + m - 1) // m) * m


# ----------------------------------------------------------------------------
# Pallas kernel: tiled matmul with fused bias add  (out = x @ W + b)
# ----------------------------------------------------------------------------
def _matmul_bias_kernel(x_ref, w_ref, b_ref, o_ref, acc_ref):
    @pl.when(pl.program_id(2) == 0)
    def _init():
        acc_ref[...] = jnp.zeros_like(acc_ref)

    acc_ref[...] += jnp.dot(
        x_ref[...], w_ref[...], preferred_element_type=jnp.float32
    )

    @pl.when(pl.program_id(2) == pl.num_programs(2) - 1)
    def _finalize():
        # Bias add + final cast kept in f32 (v5e VPU has no bf16 path).
        o_ref[...] = (acc_ref[...] + b_ref[...].astype(jnp.float32)).astype(o_ref.dtype)


def linear_pallas(x, w, b, *, tm=256, tn=512, tk=512,
                  compute_dtype=jnp.bfloat16, out_dtype=None):
    """x: [..., K], w: [K, N], b: [N]  ->  [..., N]  computed as x @ w + b."""
    orig_shape = x.shape
    K = orig_shape[-1]
    Kw, N = w.shape
    assert Kw == K, (Kw, K)
    out_dtype = x.dtype if out_dtype is None else out_dtype

    x2 = x.reshape(-1, K)
    M = x2.shape[0]

    # ---- tile selection: aligned to the (8, 128) layout, never larger than
    #      the padded array dims (keeps small shapes at a single tile).
    tm = _round_up(min(tm, _round_up(M, 8)), 8)
    tn = _round_up(min(tn, _round_up(N, 128)), 128)      # lane-dense output
    tk = _round_up(min(tk, _round_up(K, 128)), 128)

    M_pad = _round_up(M, tm)
    N_pad = _round_up(N, tn)
    K_pad = _round_up(K, tk)

    # v7x has 2 TensorCores: if the (i, j) grid collapsed to one tile, split N
    # so the 'parallel' grid axes can be sharded across both cores.
    if (M_pad // tm) * (N_pad // tn) < 2 and tn >= 256:
        tn //= 2   # still a multiple of 128; N_pad stays divisible.

    grid = (M_pad // tm, N_pad // tn, K_pad // tk)

    # ---- pad + cast operands (zero padding along K contributes nothing to
    #      the dot product; padded rows/cols are sliced off at the end).
    xc = x2.astype(compute_dtype)
    wc = w.astype(compute_dtype)
    if (M_pad, K_pad) != (M, K):
        xc = jnp.pad(xc, ((0, M_pad - M), (0, K_pad - K)))
    if (K_pad, N_pad) != (K, N):
        wc = jnp.pad(wc, ((0, K_pad - K), (0, N_pad - N)))
    b2 = b.reshape(1, N).astype(jnp.float32)
    if N_pad != N:
        b2 = jnp.pad(b2, ((0, 0), (0, N_pad - N)))

    # ---- explicit VMEM budget: double-buffered input/output tiles + f32 acc,
    #      derived from the chosen tiles (also fits v7x's 64 MiB VMEM).
    in_bytes = jnp.dtype(compute_dtype).itemsize
    out_bytes = jnp.dtype(out_dtype).itemsize
    vmem_bytes = (2 * (tm * tk + tk * tn) * in_bytes   # x, w tiles (double-buffered)
                  + 2 * tn * 4                         # bias tile (f32)
                  + 2 * tm * tn * out_bytes            # output tile (double-buffered)
                  + tm * tn * 4)                       # f32 accumulator scratch
    vmem_limit = int(min(max(2 * vmem_bytes, 16 << 20), 96 << 20))

    cost = pl.CostEstimate(
        flops=2 * M_pad * N_pad * K_pad,
        transcendentals=0,
        bytes_accessed=(M_pad * K_pad * in_bytes
                        + K_pad * N_pad * in_bytes
                        + M_pad * N_pad * out_bytes),
    )

    out = pl.pallas_call(
        _matmul_bias_kernel,
        out_shape=jax.ShapeDtypeStruct((M_pad, N_pad), out_dtype),
        grid_spec=pltpu.PrefetchScalarGridSpec(
            num_scalar_prefetch=0,
            grid=grid,
            in_specs=[
                pl.BlockSpec((tm, tk), lambda i, j, k: (i, k)),
                pl.BlockSpec((tk, tn), lambda i, j, k: (k, j)),
                pl.BlockSpec((1, tn), lambda i, j, k: (0, j)),
            ],
            out_specs=pl.BlockSpec((tm, tn), lambda i, j, k: (i, j)),
            scratch_shapes=[pltpu.VMEM((tm, tn), jnp.float32)],
        ),
        compiler_params=pltpu.CompilerParams(
            dimension_semantics=("parallel", "parallel", "arbitrary"),
            vmem_limit_bytes=vmem_limit,
        ),
        cost_estimate=cost,
    )(xc, wc, b2)

    out = out[:M, :N]
    return out.reshape(*orig_shape[:-1], N)


# ----------------------------------------------------------------------------
# Parameter setup (plain JAX glue)
# ----------------------------------------------------------------------------
def tt_cores_to_matrix(cores, in_dims, out_dims):
    """Contract TT cores G_i [r_{i-1}, d_i, r_i] into W [in_features, out_features]."""
    full = cores[0]
    for c in cores[1:]:
        full = jnp.tensordot(full, c, axes=([-1], [0]))
    # full shape: [1, n1..nk, m1..mk, 1]
    full = full.reshape(tuple(in_dims) + tuple(out_dims))
    in_f = int(np.prod(in_dims))
    out_f = int(np.prod(out_dims))
    return full.reshape(in_f, out_f)


class TTConfig:
    def __init__(self, shape, ranks):
        self.shape = shape    # [n1..nk, m1..mk]
        self.ranks = ranks    # [1, r1, ..., r_{2k-1}, 1]


class WrappedLinear:
    """JAX/Pallas port of wrapped_linear_layers (forward pass only)."""

    def __init__(self, in_features, out_features, bias=True, tensorized=False,
                 config=None, key=None):
        self.in_features = in_features
        self.out_features = out_features
        self.tensorized = tensorized
        key = jax.random.PRNGKey(0) if key is None else key

        if tensorized:
            assert config is not None
            shape = config.shape
            ranks = config.ranks
            ndims = len(shape)
            k = ndims // 2
            in_dims, out_dims = shape[:k], shape[k:]
            assert int(np.prod(in_dims)) == in_features
            assert int(np.prod(out_dims)) == out_features

            # TensorTrain init: target stddev sqrt(1/(in+out)) for the
            # reconstructed matrix; deterministic gaussian cores.
            target_sdv = math.sqrt(1.0 / (in_features + out_features))
            core_std = (target_sdv / float(np.prod(ranks))) ** (1.0 / ndims)
            cores = []
            for i in range(ndims):
                key, sub = jax.random.split(key)
                cores.append(
                    core_std * jax.random.normal(
                        sub, (ranks[i], shape[i], ranks[i + 1]), jnp.float32)
                )
            self.factors = cores
            # TT_forward(x, *factors) == x @ W ; W reconstructed ONCE here
            # (parameter setup), never on the hot path.
            self.w = tt_cores_to_matrix(cores, in_dims, out_dims)

            if bias:
                stdv = 1.0 / math.sqrt(out_features)
                key, sub = jax.random.split(key)
                self.b = jax.random.uniform(
                    sub, (out_features,), jnp.float32, minval=-stdv, maxval=stdv)
            else:
                self.b = jnp.zeros((out_features,), jnp.float32)  # PyTorch uses scalar 0
        else:
            # torch.nn.Linear init: U(-1/sqrt(in), 1/sqrt(in)) for W [out, in] and b.
            bound = 1.0 / math.sqrt(in_features)
            key, kw, kb = jax.random.split(key, 3)
            w_oi = jax.random.uniform(
                kw, (out_features, in_features), jnp.float32, minval=-bound, maxval=bound)
            self.w = w_oi.T  # kernel computes x @ W with W [in, out]
            if bias:
                self.b = jax.random.uniform(
                    kb, (out_features,), jnp.float32, minval=-bound, maxval=bound)
            else:
                self.b = jnp.zeros((out_features,), jnp.float32)

    def __call__(self, x, config_forward=None):
        return linear_pallas(x, self.w, self.b)


# ----------------------------------------------------------------------------
# Demo / self-test
# ----------------------------------------------------------------------------
def _ref_linear(x, w, b, compute_dtype=jnp.bfloat16):
    # Reference matching the kernel's numerics: bf16-rounded operands,
    # exact f32 products + f32 accumulation.
    xr = x.astype(compute_dtype).astype(jnp.float32)
    wr = w.astype(compute_dtype).astype(jnp.float32)
    return (xr @ wr + b).astype(x.dtype)


if __name__ == "__main__":
    key = jax.random.PRNGKey(0)
    batch, seq, in_features, out_features = 2, 8, 32, 64
    key, kx = jax.random.split(key)
    x = jax.random.normal(kx, (batch, seq, in_features), jnp.float32)

    # --- non-tensorized path (torch.nn.Linear equivalent) ---
    key, k1 = jax.random.split(key)
    lin = WrappedLinear(in_features, out_features, bias=True, tensorized=False, key=k1)
    y_dense = jax.block_until_ready(lin(x))
    ref_dense = _ref_linear(x, lin.w, lin.b)
    assert y_dense.shape == (batch, seq, out_features)
    np.testing.assert_allclose(np.asarray(y_dense), np.asarray(ref_dense),
                               rtol=1e-3, atol=1e-3)

    # --- tensorized path (TensorizedLinear_module equivalent) ---
    # shape [n1,n2,m1,m2] = [4,8, 8,8]  -> in=32, out=64 ; TT ranks [1,4,4,4,1]
    cfg = TTConfig(shape=[4, 8, 8, 8], ranks=[1, 4, 4, 4, 1])
    key, k2 = jax.random.split(key)
    tt_lin = WrappedLinear(in_features, out_features, bias=True,
                           tensorized=True, config=cfg, key=k2)
    y_tt = jax.block_until_ready(tt_lin(x, config_forward=None))
    ref_tt = _ref_linear(x, tt_lin.w, tt_lin.b)
    assert y_tt.shape == (batch, seq, out_features)
    np.testing.assert_allclose(np.asarray(y_tt), np.asarray(ref_tt),
                               rtol=1e-3, atol=1e-3)

    # --- remainder handling: non-multiple-of-8 row count (M = 15) ---
    key, kx2 = jax.random.split(key)
    x_odd = jax.random.normal(kx2, (3, 5, in_features), jnp.float32)
    y_odd = jax.block_until_ready(lin(x_odd))
    ref_odd = _ref_linear(x_odd, lin.w, lin.b)
    assert y_odd.shape == (3, 5, out_features)
    np.testing.assert_allclose(np.asarray(y_odd), np.asarray(ref_odd),
                               rtol=1e-3, atol=1e-3)

    print("KERNEL_OK")
</pallas_src>

<mosaic_0001>
module attributes {stable_mosaic.version = 11 : i64} {
  func.func @_matmul_bias_kernel(%arg0: i32, %arg1: i32, %arg2: i32, %arg3: memref<16x128xbf16, #tpu.memory_space<vmem>>, %arg4: memref<128x128xbf16, #tpu.memory_space<vmem>>, %arg5: memref<1x128xf32, #tpu.memory_space<vmem>>, %arg6: memref<16x128xf32, #tpu.memory_space<vmem>>, %arg7: memref<16x128xf32, #tpu.memory_space<vmem>>) attributes {dimension_semantics = [#tpu.dimension_semantics<parallel>, #tpu.dimension_semantics<parallel>, #tpu.dimension_semantics<arbitrary>], iteration_bounds = array<i64: 1, 1, 1>, scalar_prefetch = 0 : i64, scratch_operands = 1 : i64, tpu.core_type = #tpu.core_type<tc>, window_params = [{transform_indices = @transform_0, window_bounds = array<i64: 16, 128>}, {transform_indices = @transform_1, window_bounds = array<i64: 128, 128>}, {transform_indices = @transform_2, window_bounds = array<i64: 1, 128>}, {transform_indices = @transform_3, window_bounds = array<i64: 16, 128>}]} {
    %c0_i32 = arith.constant 0 : i32
    %0 = arith.cmpi eq, %arg2, %c0_i32 : i32
    %1 = arith.extui %0 : i1 to i32
    %c0_i32_0 = arith.constant 0 : i32
    %2 = arith.cmpi ne, %1, %c0_i32_0 : i32
    scf.if %2 {
      %cst_10 = arith.constant 0.000000e+00 : f32
      %12 = vector.broadcast %cst_10 : f32 to vector<16x128xf32>
      %c0_11 = arith.constant 0 : index
      %c0_12 = arith.constant 0 : index
      %13 = vector.load %arg7[%c0_11, %c0_12] : memref<16x128xf32, #tpu.memory_space<vmem>>, vector<16x128xf32>
      tpu.vector_store %arg7[%c0_11, %c0_12], %12 {strides = array<i32>} : memref<16x128xf32, #tpu.memory_space<vmem>>, vector<16x128xf32>,
    } else {
    }
    %c0 = arith.constant 0 : index
    %c0_1 = arith.constant 0 : index
    %3 = vector.load %arg7[%c0, %c0_1] : memref<16x128xf32, #tpu.memory_space<vmem>>, vector<16x128xf32>
    %c0_2 = arith.constant 0 : index
    %c0_3 = arith.constant 0 : index
    %4 = vector.load %arg3[%c0_2, %c0_3] : memref<16x128xbf16, #tpu.memory_space<vmem>>, vector<16x128xbf16>
    %c0_4 = arith.constant 0 : index
    %c0_5 = arith.constant 0 : index
    %5 = vector.load %arg4[%c0_4, %c0_5] : memref<128x128xbf16, #tpu.memory_space<vmem>>, vector<128x128xbf16>
    %cst = arith.constant dense<0.000000e+00> : vector<16x128xf32>
    %6 = tpu.matmul %4, %5, %cst {dimension_numbers = #tpu.dot_dimension_numbers<[1], [0], [0], [1], [0, 0, 1, 1], [], []>} : vector<16x128xbf16>, vector<128x128xbf16>, vector<16x128xf32> -> vector<16x128xf32>
    %7 = arith.addf %3, %6 : vector<16x128xf32>
    %c0_6 = arith.constant 0 : index
    %c0_7 = arith.constant 0 : index
    %8 = vector.load %arg7[%c0_6, %c0_7] : memref<16x128xf32, #tpu.memory_space<vmem>>, vector<16x128xf32>
    tpu.vector_store %arg7[%c0_6, %c0_7], %7 {strides = array<i32>} : memref<16x128xf32, #tpu.memory_space<vmem>>, vector<16x128xf32>,
    %c0_i32_8 = arith.constant 0 : i32
    %9 = arith.cmpi eq, %arg2, %c0_i32_8 : i32
    %10 = arith.extui %9 : i1 to i32
    %c0_i32_9 = arith.constant 0 : i32
    %11 = arith.cmpi ne, %10, %c0_i32_9 : i32
    scf.if %11 {
      %c0_10 = arith.constant 0 : index
      %c0_11 = arith.constant 0 : index
      %12 = vector.load %arg7[%c0_10, %c0_11] : memref<16x128xf32, #tpu.memory_space<vmem>>, vector<16x128xf32>
      %c0_12 = arith.constant 0 : index
      %c0_13 = arith.constant 0 : index
      %13 = vector.load %arg5[%c0_12, %c0_13] : memref<1x128xf32, #tpu.memory_space<vmem>>, vector<1x128xf32>
      %14 = vector.broadcast %13 : vector<1x128xf32> to vector<16x128xf32>
      %15 = arith.addf %12, %14 : vector<16x128xf32>
      %c0_14 = arith.constant 0 : index
      %c0_15 = arith.constant 0 : index
      %16 = vector.load %arg6[%c0_14, %c0_15] : memref<16x128xf32, #tpu.memory_space<vmem>>, vector<16x128xf32>
      tpu.vector_store %arg6[%c0_14, %c0_15], %15 {strides = array<i32>} : memref<16x128xf32, #tpu.memory_space<vmem>>, vector<16x128xf32>,
    } else {
    }
    return
  }
  func.func @transform_0(%arg0: i32, %arg1: i32, %arg2: i32) -> (i32, i32) {
    %c0_i32 = arith.constant 0 : i32
    return %arg0, %arg2 : i32, i32
  }
  func.func @transform_1(%arg0: i32, %arg1: i32, %arg2: i32) -> (i32, i32) {
    %c0_i32 = arith.constant 0 : i32
    return %arg2, %arg1 : i32, i32
  }
  func.func @transform_2(%arg0: i32, %arg1: i32, %arg2: i32) -> (i32, i32) {
    %c0_i32 = arith.constant 0 : i32
    %c0_i32_0 = arith.constant 0 : i32
    return %c0_i32, %arg1 : i32, i32
  }
  func.func @transform_3(%arg0: i32, %arg1: i32, %arg2: i32) -> (i32, i32) {
    %c0_i32 = arith.constant 0 : i32
    return %arg0, %arg1 : i32, i32
  }
}

</mosaic_0001>

<llo_original>
// kernel: tpu_custom_call.1
$region0: #{tpu_custom_call.1}
  #allocation0 [shape = 'u32[]', space=smem, size = 0x4, offset = 0x4, fixed_abs, tag = 'smem constant byte address 0x4 - core index']
  #allocation1 [shape = 'u32[144,128]{1,0:T(1,128)}', space=vmem, size = 0x12000, scoped, tag = 'internal scratch']
  #allocation2 [shape = 'f32[16,128]{1,0:T(8,128)}', space=vmem, size = 0x2000, scoped, tag = 'scratch operand']
  %s0 = inlined_call_operand.hbm [shape: bf16[16,128], index: 0, kind: input, shape index: {}]
  %s1 = inlined_call_operand.hbm [shape: bf16[128,128], index: 1, kind: input, shape index: {}]
  %s2 = inlined_call_operand.vmem [shape: f32[1,128], index: 2, kind: input, shape index: {}]
  %s3 = inlined_call_operand.hbm [shape: f32[16,128], index: 3, kind: output, shape index: {}]
  %s4 = sld [smem:[#allocation0]]
  $region38: #{tpu_custom_call.1} parent=0
    _
  %s6 = ssub.s32 1, %s4
  %s7 = scalar_select 0, %s6, %s4
  $region1: #{tpu_custom_call.1} parent=0
    #allocation3 [shape = 'u8[4096]{0}', space=vmem, size = 0x1000, scoped, tag = 'input window, operand 0, single buffered']
    #allocation4 [shape = 's32[1]{0}', space=sflag, size = 0x4, scoped, tag = 'scoped memory for tpu_custom_call.1']
    #allocation5 [shape = 's32[1]{0}', space=sflag, size = 0x4, scoped, tag = 'scoped memory for tpu_custom_call.1']
    #allocation6 [shape = 'u8[32768]{0}', space=vmem, size = 0x8000, scoped, tag = 'input window, operand 1, single buffered']
    #allocation7 [shape = 's32[1]{0}', space=sflag, size = 0x4, scoped, tag = 'scoped memory for tpu_custom_call.1']
    #allocation8 [shape = 'u8[8192]{0}', space=vmem, size = 0x2000, scoped, tag = 'output window, operand 0, single buffered']
    %8 = vsyncpa [#allocation4], 0
    %9 = vsyncpa [#allocation7], 0
    %10 = vsyncpa [#allocation5], 0
    // Predicated region
    $region2: #{tpu_custom_call.1} parent=1 // pred_check
      _
    $region3: #{tpu_custom_call.1} parent=1 // pred_check_branch
      %12 = sbr.rel (0) target = $region5
    $region4: #{tpu_custom_call.1} parent=1 // pred_region
      %s14 = ssub.s32 128, 128
      %15 = vsyncadd [#allocation4], %s14
      %s16 = sshll.u32 [#allocation3], 4
      %s17 = int_to_ptr.vmem [resolvable:$true] %s16
      %22 = dma.hbm_to_vmem [thread:$0]  %s0, 128, %s17, [#allocation4], 64, 64, 4
    $region5: #{tpu_custom_call.1} parent=1 // pred_fallthru
      _
    // Predicated region
    $region6: #{tpu_custom_call.1} parent=1 // pred_check
      _
    $region7: #{tpu_custom_call.1} parent=1 // pred_check_branch
      %24 = sbr.rel (0) target = $region9
    $region8: #{tpu_custom_call.1} parent=1 // pred_region
      %s26 = ssub.s32 1024, 1024
      %27 = vsyncadd [#allocation7], %s26
      %s28 = sshll.u32 [#allocation6], 4
      %s29 = int_to_ptr.vmem [resolvable:$true] %s28
      %34 = dma.hbm_to_vmem [thread:$0]  %s1, 1024, %s29, [#allocation7], 64, 64, 4
    $region9: #{tpu_custom_call.1} parent=1 // pred_fallthru
      _
    // Predicated region
    $region10: #{tpu_custom_call.1} parent=1 // pred_check
      _
    $region11: #{tpu_custom_call.1} parent=1 // pred_check_branch
      %36 = sbr.rel (0) target = $region13
    $region12: #{tpu_custom_call.1} parent=1 // pred_region
      _
    $region13: #{tpu_custom_call.1} parent=1 // pred_fallthru
      _
    // Predicated region
    $region14: #{tpu_custom_call.1} parent=1 // pred_check
      _
    $region15: #{tpu_custom_call.1} parent=1 // pred_check_branch
      %38 = sbr.rel (0) target = $region17
    $region16: #{tpu_custom_call.1} parent=1 // pred_region
      %39 = dma.done [#allocation4], 128
    $region17: #{tpu_custom_call.1} parent=1 // pred_fallthru
      _
    // Predicated region
    $region18: #{tpu_custom_call.1} parent=1 // pred_check
      _
    $region19: #{tpu_custom_call.1} parent=1 // pred_check_branch
      %41 = sbr.rel (0) target = $region21
    $region20: #{tpu_custom_call.1} parent=1 // pred_region
      %42 = dma.done [#allocation7], 1024
    $region21: #{tpu_custom_call.1} parent=1 // pred_fallthru
      _
    %p44 = scmp.eq.s32.totalorder 0, 0
    // Predicated region
    $region22: #{tpu_custom_call.1} parent=1 // pred_check
      %p45 = pneg %p44
    $region23: #{tpu_custom_call.1} parent=1 // pred_check_branch
      %47 = sbr.rel (%p45) target = $region25
    $region24: #{tpu_custom_call.1} parent=1 // pred_region
      %48 = vst [vmem:[#allocation2] sm:$0xff] 0.0
      %49 = vst [vmem:[#allocation2 + $0x8] sm:$0xff] 0.0
    $region25: #{tpu_custom_call.1} parent=1 // pred_fallthru
      _
    %v50 = vld [vmem:[#allocation2] sm:$0xff]
    %v51 = vld [vmem:[#allocation2 + $0x8] sm:$0xff]
    %v52 = vld [vmem:[#allocation3] sm:$0xf]
    %v53 = vld [vmem:[#allocation3 + $0x4] sm:$0xf]
    %v54 = vld [vmem:[#allocation6] sm:$0xf]
    %v55 = vld [vmem:[#allocation6 + $0x4] sm:$0xf]
    %v56 = vld [vmem:[#allocation6 + $0x8] sm:$0xf]
    %v57 = vld [vmem:[#allocation6 + $0xc] sm:$0xf]
    %v58 = vld [vmem:[#allocation6 + $0x10] sm:$0xf]
    %v59 = vld [vmem:[#allocation6 + $0x14] sm:$0xf]
    %v60 = vld [vmem:[#allocation6 + $0x18] sm:$0xf]
    %v61 = vld [vmem:[#allocation6 + $0x1c] sm:$0xf]
    %v62 = vld [vmem:[#allocation6 + $0x20] sm:$0xf]
    %v63 = vld [vmem:[#allocation6 + $0x24] sm:$0xf]
    %v64 = vld [vmem:[#allocation6 + $0x28] sm:$0xf]
    %v65 = vld [vmem:[#allocation6 + $0x2c] sm:$0xf]
    %v66 = vld [vmem:[#allocation6 + $0x30] sm:$0xf]
    %v67 = vld [vmem:[#allocation6 + $0x34] sm:$0xf]
    %v68 = vld [vmem:[#allocation6 + $0x38] sm:$0xf]
    %v69 = vld [vmem:[#allocation6 + $0x3c] sm:$0xf]
    %v72 = vunpack.c.l.b16 %v52
    %v73 = vunpack.c.l.b16 %v53
    %v74 = vpack.c.b16 %v73, %v72
    %v92 = vunpack.c.l.b16 %v54
    %v93 = vunpack.c.l.b16 %v55
    %v94 = vunpack.c.l.b16 %v56
    %v95 = vunpack.c.l.b16 %v57
    %v96 = vunpack.c.l.b16 %v58
    %v97 = vunpack.c.l.b16 %v59
    %v98 = vunpack.c.l.b16 %v60
    %v99 = vunpack.c.l.b16 %v61
    %v100 = vunpack.c.l.b16 %v62
    %v101 = vunpack.c.l.b16 %v63
    %v102 = vunpack.c.l.b16 %v64
    %v103 = vunpack.c.l.b16 %v65
    %v104 = vunpack.c.l.b16 %v66
    %v105 = vunpack.c.l.b16 %v67
    %v106 = vunpack.c.l.b16 %v68
    %v107 = vunpack.c.l.b16 %v69
    %v108 = vpack.c.b16 %v93, %v92
    %v109 = vpack.c.b16 %v95, %v94
    %v110 = vpack.c.b16 %v97, %v96
    %v111 = vpack.c.b16 %v99, %v98
    %v112 = vpack.c.b16 %v101, %v100
    %v113 = vpack.c.b16 %v103, %v102
    %v114 = vpack.c.b16 %v105, %v104
    %v115 = vpack.c.b16 %v107, %v106
    %124 = vmatprep.subr.bf16.mxu0 0
    %125 = vmatpush1.bf16.msra.mxu0 %v115
    %126 = vmatprep.subr.bf16.mxu0 0
    %127 = vmatpush1.bf16.msra.mxu0 %v114
    %128 = vmatprep.subr.bf16.mxu0 0
    %129 = vmatpush1.bf16.msra.mxu0 %v113
    %130 = vmatprep.subr.bf16.mxu0 0
    %131 = vmatpush1.bf16.msra.mxu0 %v112
    %132 = vmatprep.subr.bf16.mxu0 0
    %133 = vmatpush1.bf16.msra.mxu0 %v111
    %134 = vmatprep.subr.bf16.mxu0 0
    %135 = vmatpush1.bf16.msra.mxu0 %v110
    %136 = vmatprep.subr.bf16.mxu0 0
    %137 = vmatpush1.bf16.msra.mxu0 %v109
    %138 = vmatprep.subr.bf16.mxu0 0
    %139 = vmatpush1.bf16.msra.mxu0 %v108
    %140 = vmatprep.subr.bf16.mxu0 0
    %141 = vmatpush2.bf16.msra.mxu0 0
    %142 = vmatprep.subr.bf16.mxu0 0
    %143 = vmatpush2.bf16.msra.mxu0 0
    %144 = vmatprep.subr.bf16.mxu0 0
    %145 = vmatpush2.bf16.msra.mxu0 0
    %146 = vmatprep.subr.bf16.mxu0 0
    %147 = vmatpush2.bf16.msra.mxu0 0
    %148 = vmatprep.subr.bf16.mxu0 0
    %149 = vmatpush2.bf16.msra.mxu0 0
    %150 = vmatprep.subr.bf16.mxu0 0
    %151 = vmatpush2.bf16.msra.mxu0 0
    %152 = vmatprep.subr.bf16.mxu0 0
    %153 = vmatpush2.bf16.msra.mxu0 0
    %154 = vmatprep.subr.bf16.mxu0 0
    %155 = vmatpush2.bf16.msra.mxu0 0
    %156 = vmatprep.mubr.bf16.mxu0 0
    %157 = vmatmul.mubr.bf16.gmra.mxu0 %v74
    %v158 = vpop.f32.mrf.mxu0
    %v159 = vadd.f32 0.0, %v158
    %v160 = vpop.f32.mrf.mxu0
    %v161 = vpop.f32.mrf.mxu0
    %v162 = vadd.f32 0.0, %v161
    %v163 = vpop.f32.mrf.mxu0
    %164 = vdwg.mxu0
    %v165 = vadd.f32 %v50, %v159
    %v166 = vadd.f32 %v51, %v162
    %167 = vst [vmem:[#allocation2] sm:$0xff] %v165
    %168 = vst [vmem:[#allocation2 + $0x8] sm:$0xff] %v166
    // Predicated region
    $region26: #{tpu_custom_call.1} parent=1 // pred_check
      %p169 = pneg %p44
    $region27: #{tpu_custom_call.1} parent=1 // pred_check_branch
      %171 = sbr.rel (%p169) target = $region29
    $region28: #{tpu_custom_call.1} parent=1 // pred_region
      %v172 = vld [vmem:[#allocation2] sm:$0xff]
      %v173 = vld [vmem:[#allocation2 + $0x8] sm:$0xff]
      %v174 = vld [vmem:[%s2] sm:$0x1]
      %v176 = vlaneseq
      %v177 = vshrl.u32 %v176, 7
      %v178 = vsub.s32 0, %v177
      %v179 = vrot.slane %v174, %v178
      %v181 = vadd.f32 %v172, %v179
      %v182 = vadd.f32 %v173, %v179
      %183 = vst [vmem:[#allocation8] sm:$0xff] %v181
      %184 = vst [vmem:[#allocation8 + $0x8] sm:$0xff] %v182
    $region29: #{tpu_custom_call.1} parent=1 // pred_fallthru
      _
    // Predicated region
    $region30: #{tpu_custom_call.1} parent=1 // pred_check
      _
    $region31: #{tpu_custom_call.1} parent=1 // pred_check_branch
      %186 = sbr.rel (0) target = $region33
    $region32: #{tpu_custom_call.1} parent=1 // pred_region
      %s188 = ssub.s32 256, 256
      %189 = vsyncadd [#allocation5], %s188
      %s190 = sshll.u32 [#allocation8], 4
      %s191 = int_to_ptr.vmem [resolvable:$true] %s190
      %196 = dma.vmem_to_hbm [thread:$0]  %s191, 256, %s3, [#allocation5], 128, 128, 8
    $region33: #{tpu_custom_call.1} parent=1 // pred_fallthru
      _
    // Predicated region
    $region34: #{tpu_custom_call.1} parent=1 // pred_check
      _
    $region35: #{tpu_custom_call.1} parent=1 // pred_check_branch
      %198 = sbr.rel (0) target = $region37
    $region36: #{tpu_custom_call.1} parent=1 // pred_region
      %199 = dma.done [#allocation5], 256
    $region37: #{tpu_custom_call.1} parent=1 // pred_fallthru
      _
    %200 = vsyncpa [#allocation4], 1
    %201 = vsyncpa [#allocation7], 1
    %202 = vsyncpa [#allocation5], 1

</llo_original>
